<compile_context>
chip_gen: v6e
topology: v6e:2x2x1
jax: 0.10.0
libtpu: 0.0.40
codegen_flags: <defaults>
</compile_context>

<pallas_src>
import jax
import jax.numpy as jnp
from jax.experimental import pallas as pl
from jax.experimental.pallas import tpu as pltpu


def _round_up(x, m):
    return ((x + m - 1) // m) * m


# ----------------------------------------------------------------------------
# Pallas kernel: fused 5-layer MLP (4x Linear+ReLU, Q head as a lane reduction)
# ----------------------------------------------------------------------------
def make_critic_kernel(layer_dims):
    n = len(layer_dims)

    def kernel(x_ref, w_ref, b_ref, out_ref):
        h = x_ref[...]                              # (TB, d_in) f32
        # Hidden layers: h = relu(h @ W + b).  Static slices into packed blobs.
        for li in range(n - 1):
            fi, fo = layer_dims[li]
            w = w_ref[li, :fi, :fo]                 # (fi, fo)
            b = b_ref[li:li + 1, :fo]               # (1, fo) -> broadcast over rows
            h = jnp.dot(h, w, preferred_element_type=jnp.float32) + b
            h = jnp.maximum(h, 0.0)
        # Q head (out dim == 1): VPU multiply + XLU lane reduce, no MXU pass.
        fi, _ = layer_dims[-1]
        wq_row = w_ref[n - 1, 0:1, :fi]             # (1, fi), packed pre-transposed
        bq = b_ref[n - 1:n, 0:1]                    # (1, 1)
        q = jnp.sum(h * wq_row, axis=-1, keepdims=True) + bq   # (TB, 1)
        # TODO(synk): output block is (TB, 1) (lane-sparse masked store); a
        # lane-dense (1, TB) layout would need a sublane->lane relayout.
        out_ref[...] = q.astype(out_ref.dtype)

    return kernel


# ----------------------------------------------------------------------------
# Parameter packing: one weight blob + one bias blob -> 2 parameter DMAs
# ----------------------------------------------------------------------------
def pack_params(params):
    """Pack weights into (L, R, C) and biases into (L, C), zero padded.

    The final (Q-head) weight is stored transposed as a (1, in) row so the
    kernel can do a lane reduction instead of an N=1 MXU matmul.
    """
    n = len(params)
    ws, bs = [], []
    for i, (W, b) in enumerate(params):
        Wp = W.T if i == n - 1 else W
        ws.append(Wp)
        bs.append(jnp.reshape(b, (-1,)))
    max_r = _round_up(max(w.shape[0] for w in ws), 8)
    max_c = _round_up(max(w.shape[1] for w in ws), 8)
    w_blob = jnp.zeros((n, max_r, max_c), jnp.float32)
    b_blob = jnp.zeros((n, max_c), jnp.float32)
    for i, (w, b) in enumerate(zip(ws, bs)):
        w_blob = w_blob.at[i, :w.shape[0], :w.shape[1]].set(w)
        b_blob = b_blob.at[i, :b.shape[0]].set(b)
    return w_blob, b_blob


# ----------------------------------------------------------------------------
# Wrapper: batch-tiled pallas_call with VMEM-resident parameters
# ----------------------------------------------------------------------------
def critic_forward(x, params, *, block_b=256):
    """x: (B, D_in) float32.  params: list of (W, b) with W in (in, out) layout."""
    B, d_in = x.shape
    layer_dims = tuple((int(W.shape[0]), int(W.shape[1])) for W, _ in params)
    assert layer_dims[0][0] == d_in
    assert layer_dims[-1][1] == 1

    w_blob, b_blob = pack_params(params)

    # Batch tile: >=128 for real batches, minimal 8-aligned tile for tiny ones.
    TB = block_b if B >= block_b else max(8, _round_up(B, 8))
    B_pad = _round_up(B, TB)
    if B_pad != B:
        x = jnp.pad(x, ((0, B_pad - B), (0, 0)))

    out = pl.pallas_call(
        make_critic_kernel(layer_dims),
        out_shape=jax.ShapeDtypeStruct((B_pad, 1), jnp.float32),
        grid=(B_pad // TB,),
        in_specs=[
            pl.BlockSpec((TB, d_in), lambda i: (i, 0)),        # streamed batch tile
            pl.BlockSpec(w_blob.shape, lambda i: (0, 0, 0)),   # resident weights
            pl.BlockSpec(b_blob.shape, lambda i: (0, 0)),      # resident biases
        ],
        out_specs=pl.BlockSpec((TB, 1), lambda i: (i, 0)),
        compiler_params=pltpu.CompilerParams(
            dimension_semantics=("parallel",)),
    )(x, w_blob, b_blob)
    return out[:B]


# ----------------------------------------------------------------------------
# Deterministic parameter init (mirrors nn.Linear + xavier_uniform_ on weights)
# ----------------------------------------------------------------------------
def xavier_uniform(key, fan_in, fan_out):
    bound = jnp.sqrt(6.0 / (fan_in + fan_out))
    # stored as (in, out) so the kernel computes x @ W
    return jax.random.uniform(key, (fan_in, fan_out), jnp.float32, -bound, bound)


def linear_bias(key, fan_in, fan_out):
    # torch nn.Linear default bias init: U(-1/sqrt(fan_in), 1/sqrt(fan_in))
    bound = 1.0 / jnp.sqrt(jnp.float32(fan_in))
    return jax.random.uniform(key, (1, fan_out), jnp.float32, -bound, bound)


def make_params(key, layer_dims):
    params = []
    for (fi, fo) in layer_dims:
        key, kw, kb = jax.random.split(key, 3)
        params.append((xavier_uniform(kw, fi, fo), linear_bias(kb, fi, fo)))
    return params


# ----------------------------------------------------------------------------
# Pure-JAX reference for correctness check
# ----------------------------------------------------------------------------
def critic_ref(x, params):
    h = x
    for (W, b) in params[:-1]:
        h = jnp.maximum(h @ W + b, 0.0)
    Wq, bq = params[-1]
    return h @ Wq + bq


if __name__ == "__main__":
    cfg = {
        "l1": (32, 64),
        "l2": (64, 64),
        "l3": (64, 32),
        "l4": (32, 32),
        "l5": (32, 1),
    }
    layer_dims = [cfg[k] for k in ("l1", "l2", "l3", "l4", "l5")]

    key = jax.random.PRNGKey(0)
    key, pkey, xkey, xkey2 = jax.random.split(key, 4)
    params = make_params(pkey, layer_dims)

    # Small batch (module-scale smoke test, single grid step).
    batch = 8
    state_action = jax.random.normal(xkey, (batch, cfg["l1"][0]), jnp.float32)
    q = jax.block_until_ready(critic_forward(state_action, params))
    q_ref = critic_ref(state_action, params)
    assert q.shape == (batch, 1), q.shape
    assert jnp.allclose(q, q_ref, atol=1e-5, rtol=1e-5), (
        f"mismatch (small batch): max abs err = {jnp.max(jnp.abs(q - q_ref))}"
    )

    # Larger batch exercises the batch grid (2 steps of TB=256, with padding).
    batch2 = 300
    x2 = jax.random.normal(xkey2, (batch2, cfg["l1"][0]), jnp.float32)
    q2 = jax.block_until_ready(critic_forward(x2, params))
    q2_ref = critic_ref(x2, params)
    assert q2.shape == (batch2, 1), q2.shape
    assert jnp.allclose(q2, q2_ref, atol=1e-5, rtol=1e-5), (
        f"mismatch (batched): max abs err = {jnp.max(jnp.abs(q2 - q2_ref))}"
    )

    print("KERNEL_OK")
</pallas_src>

<mosaic_0001>
module attributes {stable_mosaic.version = 11 : i64} {
  func.func @kernel(%arg0: i32, %arg1: memref<8x32xf32, #tpu.memory_space<vmem>>, %arg2: memref<5x64x64xf32, #tpu.memory_space<vmem>>, %arg3: memref<5x64xf32, #tpu.memory_space<vmem>>, %arg4: memref<8x1xf32, #tpu.memory_space<vmem>>) attributes {dimension_semantics = [#tpu.dimension_semantics<parallel>], iteration_bounds = array<i64: 1>, scalar_prefetch = 0 : i64, scratch_operands = 0 : i64, tpu.core_type = #tpu.core_type<tc>, window_params = [{transform_indices = @transform_0, window_bounds = array<i64: 8, 32>}, {pipeline_mode = #tpu.pipeline_mode<synchronous>, transform_indices = @transform_1, window_bounds = array<i64: 5, 64, 64>}, {pipeline_mode = #tpu.pipeline_mode<synchronous>, transform_indices = @transform_2, window_bounds = array<i64: 5, 64>}, {transform_indices = @transform_3, window_bounds = array<i64: 8, 1>}]} {
    %c0 = arith.constant 0 : index
    %c0_0 = arith.constant 0 : index
    %0 = vector.load %arg1[%c0, %c0_0] : memref<8x32xf32, #tpu.memory_space<vmem>>, vector<8x32xf32>
    %c0_1 = arith.constant 0 : index
    %c0_2 = arith.constant 0 : index
    %c0_3 = arith.constant 0 : index
    %1 = vector.load %arg2[%c0_1, %c0_2, %c0_3] : memref<5x64x64xf32, #tpu.memory_space<vmem>>, vector<1x32x64xf32>
    %2 = vector.shape_cast %1 : vector<1x32x64xf32> to vector<32x64xf32>
    %c0_4 = arith.constant 0 : index
    %c0_5 = arith.constant 0 : index
    %3 = vector.load %arg3[%c0_4, %c0_5] : memref<5x64xf32, #tpu.memory_space<vmem>>, vector<1x64xf32>
    %cst = arith.constant dense<0.000000e+00> : vector<8x64xf32>
    %4 = tpu.matmul %0, %2, %cst {dimension_numbers = #tpu.dot_dimension_numbers<[1], [0], [0], [1], [0, 0, 1, 1], [], []>} : vector<8x32xf32>, vector<32x64xf32>, vector<8x64xf32> -> vector<8x64xf32>
    %5 = vector.broadcast %3 : vector<1x64xf32> to vector<8x64xf32>
    %6 = arith.addf %4, %5 : vector<8x64xf32>
    %cst_6 = arith.constant 0.000000e+00 : f32
    %7 = vector.broadcast %cst_6 : f32 to vector<8x64xf32>
    %8 = arith.maximumf %6, %7 : vector<8x64xf32>
    %c1 = arith.constant 1 : index
    %c0_7 = arith.constant 0 : index
    %c0_8 = arith.constant 0 : index
    %9 = vector.load %arg2[%c1, %c0_7, %c0_8] : memref<5x64x64xf32, #tpu.memory_space<vmem>>, vector<1x64x64xf32>
    %10 = vector.shape_cast %9 : vector<1x64x64xf32> to vector<64x64xf32>
    %c1_9 = arith.constant 1 : index
    %c0_10 = arith.constant 0 : index
    %11 = vector.load %arg3[%c1_9, %c0_10] : memref<5x64xf32, #tpu.memory_space<vmem>>, vector<1x64xf32>
    %cst_11 = arith.constant dense<0.000000e+00> : vector<8x64xf32>
    %12 = tpu.matmul %8, %10, %cst_11 {dimension_numbers = #tpu.dot_dimension_numbers<[1], [0], [0], [1], [0, 0, 1, 1], [], []>} : vector<8x64xf32>, vector<64x64xf32>, vector<8x64xf32> -> vector<8x64xf32>
    %13 = vector.broadcast %11 : vector<1x64xf32> to vector<8x64xf32>
    %14 = arith.addf %12, %13 : vector<8x64xf32>
    %cst_12 = arith.constant 0.000000e+00 : f32
    %15 = vector.broadcast %cst_12 : f32 to vector<8x64xf32>
    %16 = arith.maximumf %14, %15 : vector<8x64xf32>
    %c2 = arith.constant 2 : index
    %c0_13 = arith.constant 0 : index
    %c0_14 = arith.constant 0 : index
    %17 = vector.load %arg2[%c2, %c0_13, %c0_14] : memref<5x64x64xf32, #tpu.memory_space<vmem>>, vector<1x64x32xf32>
    %18 = vector.shape_cast %17 : vector<1x64x32xf32> to vector<64x32xf32>
    %c2_15 = arith.constant 2 : index
    %c0_16 = arith.constant 0 : index
    %19 = vector.load %arg3[%c2_15, %c0_16] : memref<5x64xf32, #tpu.memory_space<vmem>>, vector<1x32xf32>
    %cst_17 = arith.constant dense<0.000000e+00> : vector<8x32xf32>
    %20 = tpu.matmul %16, %18, %cst_17 {dimension_numbers = #tpu.dot_dimension_numbers<[1], [0], [0], [1], [0, 0, 1, 1], [], []>} : vector<8x64xf32>, vector<64x32xf32>, vector<8x32xf32> -> vector<8x32xf32>
    %21 = vector.broadcast %19 : vector<1x32xf32> to vector<8x32xf32>
    %22 = arith.addf %20, %21 : vector<8x32xf32>
    %cst_18 = arith.constant 0.000000e+00 : f32
    %23 = vector.broadcast %cst_18 : f32 to vector<8x32xf32>
    %24 = arith.maximumf %22, %23 : vector<8x32xf32>
    %c3 = arith.constant 3 : index
    %c0_19 = arith.constant 0 : index
    %c0_20 = arith.constant 0 : index
    %25 = vector.load %arg2[%c3, %c0_19, %c0_20] : memref<5x64x64xf32, #tpu.memory_space<vmem>>, vector<1x32x32xf32>
    %26 = vector.shape_cast %25 : vector<1x32x32xf32> to vector<32x32xf32>
    %c3_21 = arith.constant 3 : index
    %c0_22 = arith.constant 0 : index
    %27 = vector.load %arg3[%c3_21, %c0_22] : memref<5x64xf32, #tpu.memory_space<vmem>>, vector<1x32xf32>
    %cst_23 = arith.constant dense<0.000000e+00> : vector<8x32xf32>
    %28 = tpu.matmul %24, %26, %cst_23 {dimension_numbers = #tpu.dot_dimension_numbers<[1], [0], [0], [1], [0, 0, 1, 1], [], []>} : vector<8x32xf32>, vector<32x32xf32>, vector<8x32xf32> -> vector<8x32xf32>
    %29 = vector.broadcast %27 : vector<1x32xf32> to vector<8x32xf32>
    %30 = arith.addf %28, %29 : vector<8x32xf32>
    %cst_24 = arith.constant 0.000000e+00 : f32
    %31 = vector.broadcast %cst_24 : f32 to vector<8x32xf32>
    %32 = arith.maximumf %30, %31 : vector<8x32xf32>
    %c4 = arith.constant 4 : index
    %c0_25 = arith.constant 0 : index
    %c0_26 = arith.constant 0 : index
    %33 = vector.load %arg2[%c4, %c0_25, %c0_26] : memref<5x64x64xf32, #tpu.memory_space<vmem>>, vector<1x1x32xf32>
    %34 = vector.shape_cast %33 : vector<1x1x32xf32> to vector<1x32xf32>
    %c4_27 = arith.constant 4 : index
    %c0_28 = arith.constant 0 : index
    %35 = vector.load %arg3[%c4_27, %c0_28] : memref<5x64xf32, #tpu.memory_space<vmem>>, vector<1x1xf32>
    %36 = vector.broadcast %34 : vector<1x32xf32> to vector<8x32xf32>
    %37 = arith.mulf %32, %36 : vector<8x32xf32>
    %cst_29 = arith.constant dense<0.000000e+00> : vector<8xf32>
    %38 = vector.multi_reduction <add>, %37, %cst_29 [1] : vector<8x32xf32> to vector<8xf32>
    %39 = vector.shape_cast %38 : vector<8xf32> to vector<8x1xf32>
    %40 = vector.broadcast %35 : vector<1x1xf32> to vector<8x1xf32>
    %41 = arith.addf %39, %40 : vector<8x1xf32>
    %c0_30 = arith.constant 0 : index
    %c0_31 = arith.constant 0 : index
    %42 = vector.load %arg4[%c0_30, %c0_31] : memref<8x1xf32, #tpu.memory_space<vmem>>, vector<8x1xf32>
    tpu.vector_store %arg4[%c0_30, %c0_31], %41 {strides = array<i32>} : memref<8x1xf32, #tpu.memory_space<vmem>>, vector<8x1xf32>,
    return
  }
  func.func @transform_0(%arg0: i32) -> (i32, i32) {
    %c0_i32 = arith.constant 0 : i32
    %c0_i32_0 = arith.constant 0 : i32
    return %arg0, %c0_i32 : i32, i32
  }
  func.func @transform_1(%arg0: i32) -> (i32, i32, i32) {
    %c0_i32 = arith.constant 0 : i32
    %c0_i32_0 = arith.constant 0 : i32
    %c0_i32_1 = arith.constant 0 : i32
    %c0_i32_2 = arith.constant 0 : i32
    return %c0_i32, %c0_i32_0, %c0_i32_1 : i32, i32, i32
  }
  func.func @transform_2(%arg0: i32) -> (i32, i32) {
    %c0_i32 = arith.constant 0 : i32
    %c0_i32_0 = arith.constant 0 : i32
    %c0_i32_1 = arith.constant 0 : i32
    return %c0_i32, %c0_i32_0 : i32, i32
  }
  func.func @transform_3(%arg0: i32) -> (i32, i32) {
    %c0_i32 = arith.constant 0 : i32
    %c0_i32_0 = arith.constant 0 : i32
    return %arg0, %c0_i32 : i32, i32
  }
}

</mosaic_0001>

<llo_original>
// kernel: tpu_custom_call.1
$region0: #{tpu_custom_call.1}
  #allocation0 [shape = 'u32[]', space=smem, size = 0x4, offset = 0x4, fixed_abs, tag = 'smem constant byte address 0x4 - core index']
  #allocation1 [shape = 'u32[144,128]{1,0:T(1,128)}', space=vmem, size = 0x12000, scoped, tag = 'internal scratch']
  %s0 = inlined_call_operand.hbm [shape: f32[8,32], index: 0, kind: input, shape index: {}]
  %s1 = inlined_call_operand.hbm [shape: f32[5,64,64], index: 1, kind: input, shape index: {}]
  %s2 = inlined_call_operand.hbm [shape: f32[5,64], index: 2, kind: input, shape index: {}]
  %s3 = inlined_call_operand.vmem [shape: f32[8,1], index: 3, kind: output, shape index: {}]
  %s4 = sld [smem:[#allocation0]]
  $region34: #{tpu_custom_call.1} parent=0
    _
  %s6 = ssub.s32 1, %s4
  %s7 = scalar_select 0, %s6, %s4
  $region1: #{tpu_custom_call.1} parent=0
    #allocation2 [shape = 'u8[4096]{0}', space=vmem, size = 0x1000, scoped, tag = 'input window, operand 0, single buffered']
    #allocation3 [shape = 's32[1]{0}', space=sflag, size = 0x4, scoped, tag = 'scoped memory for tpu_custom_call.1']
    #allocation4 [shape = 'u8[163840]{0}', space=vmem, size = 0x28000, scoped, tag = 'input window, operand 1, single buffered']
    #allocation5 [shape = 's32[1]{0}', space=sflag, size = 0x4, scoped, tag = 'scoped memory for tpu_custom_call.1']
    #allocation6 [shape = 'u8[4096]{0}', space=vmem, size = 0x1000, scoped, tag = 'input window, operand 2, single buffered']
    %8 = vsyncpa [#allocation3], 0
    %9 = vsyncpa [#allocation5], 0
    // Predicated region
    $region2: #{tpu_custom_call.1} parent=1 // pred_check
      _
    $region3: #{tpu_custom_call.1} parent=1 // pred_check_branch
      %11 = sbr.rel (0) target = $region5
    $region4: #{tpu_custom_call.1} parent=1 // pred_region
      %s13 = ssub.s32 128, 128
      %14 = vsyncadd [#allocation3], %s13
      %s16 = sshll.u32 [#allocation2], 4
      %s17 = int_to_ptr.vmem [resolvable:$true] %s16
      %19 = dma.hbm_to_vmem [thread:$0]  %s0, 128, %s17, [#allocation3]
    $region5: #{tpu_custom_call.1} parent=1 // pred_fallthru
      _
    // Predicated region
    $region6: #{tpu_custom_call.1} parent=1 // pred_check
      _
    $region7: #{tpu_custom_call.1} parent=1 // pred_check_branch
      %21 = sbr.rel (0) target = $region9
    $region8: #{tpu_custom_call.1} parent=1 // pred_region
      %s23 = ssub.s32 5120, 5120
      %24 = vsyncadd [#allocation5], %s23
      %s25 = sshll.u32 [#allocation4], 4
      %s26 = int_to_ptr.vmem [resolvable:$true] %s25
      %31 = dma.hbm_to_vmem [thread:$0]  %s1, 5120, %s26, [#allocation5], 128, 128, 8
    $region9: #{tpu_custom_call.1} parent=1 // pred_fallthru
      _
    // Predicated region
    $region10: #{tpu_custom_call.1} parent=1 // pred_check
      _
    $region11: #{tpu_custom_call.1} parent=1 // pred_check_branch
      %33 = sbr.rel (0) target = $region13
    $region12: #{tpu_custom_call.1} parent=1 // pred_region
      %s35 = ssub.s32 128, 128
      %36 = vsyncadd [#allocation5], %s35
      %s38 = sshll.u32 [#allocation6], 4
      %s39 = int_to_ptr.vmem [resolvable:$true] %s38
      %41 = dma.hbm_to_vmem [thread:$0]  %s2, 128, %s39, [#allocation5]
    $region13: #{tpu_custom_call.1} parent=1 // pred_fallthru
      _
    // Predicated region
    $region14: #{tpu_custom_call.1} parent=1 // pred_check
      _
    $region15: #{tpu_custom_call.1} parent=1 // pred_check_branch
      %43 = sbr.rel (0) target = $region17
    $region16: #{tpu_custom_call.1} parent=1 // pred_region
      %44 = dma.done [#allocation3], 128
    $region17: #{tpu_custom_call.1} parent=1 // pred_fallthru
      _
    // Predicated region
    $region18: #{tpu_custom_call.1} parent=1 // pred_check
      _
    $region19: #{tpu_custom_call.1} parent=1 // pred_check_branch
      %46 = sbr.rel (0) target = $region21
    $region20: #{tpu_custom_call.1} parent=1 // pred_region
      %47 = dma.done [#allocation5], 5120
    $region21: #{tpu_custom_call.1} parent=1 // pred_fallthru
      _
    // Predicated region
    $region22: #{tpu_custom_call.1} parent=1 // pred_check
      _
    $region23: #{tpu_custom_call.1} parent=1 // pred_check_branch
      %49 = sbr.rel (0) target = $region25
    $region24: #{tpu_custom_call.1} parent=1 // pred_region
      %50 = dma.done [#allocation5], 128
    $region25: #{tpu_custom_call.1} parent=1 // pred_fallthru
      _
    %v51 = vld [vmem:[#allocation2] sm:$0xff]
    %v52 = vld [vmem:[#allocation4] sm:$0xff]
    %v53 = vld [vmem:[#allocation4 + $0x8] sm:$0xff]
    %v54 = vld [vmem:[#allocation4 + $0x10] sm:$0xff]
    %v55 = vld [vmem:[#allocation4 + $0x18] sm:$0xff]
    %v56 = vld [vmem:[#allocation6] sm:$0x1]
    %v57 = vlaneseq
    %v58 = vshrl.u32 %v57, 7
    %v59 = vsub.s32 0, %v58
    %v60 = vrot.slane %v56, %v59
    %vm61 = vcmask 261120
    %v63 = vsel %vm61, %v51, 0
    %65 = vmatprep.subr.mxu0 0.0
    %66 = vmatpush1.msra.mxu0 0.0
    %67 = vmatprep.subr.mxu0 0.0
    %68 = vmatpush1.msra.mxu0 0.0
    %69 = vmatprep.subr.mxu0 0.0
    %70 = vmatpush1.msra.mxu0 0.0
    %71 = vmatprep.subr.mxu0 0.0
    %72 = vmatpush1.msra.mxu0 0.0
    %73 = vmatprep.subr.mxu0 0.0
    %74 = vmatpush1.msra.mxu0 0.0
    %75 = vmatprep.subr.mxu0 0.0
    %76 = vmatpush1.msra.mxu0 0.0
    %77 = vmatprep.subr.mxu0 0.0
    %78 = vmatpush1.msra.mxu0 0.0
    %79 = vmatprep.subr.mxu0 0.0
    %80 = vmatpush1.msra.mxu0 0.0
    %81 = vmatprep.subr.mxu0 0.0
    %82 = vmatpush1.msra.mxu0 0.0
    %83 = vmatprep.subr.mxu0 0.0
    %84 = vmatpush1.msra.mxu0 0.0
    %85 = vmatprep.subr.mxu0 0.0
    %86 = vmatpush1.msra.mxu0 0.0
    %87 = vmatprep.subr.mxu0 0.0
    %88 = vmatpush1.msra.mxu0 0.0
    %89 = vmatprep.subr.mxu0 0.0
    %90 = vmatpush1.msra.mxu0 %v55
    %91 = vmatprep.subr.mxu0 0.0
    %92 = vmatpush1.msra.mxu0 %v54
    %93 = vmatprep.subr.mxu0 0.0
    %94 = vmatpush1.msra.mxu0 %v53
    %95 = vmatprep.subr.mxu0 0.0
    %96 = vmatpush1.msra.mxu0 %v52
    %97 = vmatprep.subr.mxu0 0.0
    %98 = vmatpush2.msra.mxu0 0.0
    %99 = vmatprep.subr.mxu0 0.0
    %100 = vmatpush2.msra.mxu0 0.0
    %101 = vmatprep.subr.mxu0 0.0
    %102 = vmatpush2.msra.mxu0 0.0
    %103 = vmatprep.subr.mxu0 0.0
    %104 = vmatpush2.msra.mxu0 0.0
    %105 = vmatprep.subr.mxu0 0.0
    %106 = vmatpush2.msra.mxu0 0.0
    %107 = vmatprep.subr.mxu0 0.0
    %108 = vmatpush2.msra.mxu0 0.0
    %109 = vmatprep.subr.mxu0 0.0
    %110 = vmatpush2.msra.mxu0 0.0
    %111 = vmatprep.subr.mxu0 0.0
    %112 = vmatpush2.msra.mxu0 0.0
    %113 = vmatprep.subr.mxu0 0.0
    %114 = vmatpush2.msra.mxu0 0.0
    %115 = vmatprep.subr.mxu0 0.0
    %116 = vmatpush2.msra.mxu0 0.0
    %117 = vmatprep.subr.mxu0 0.0
    %118 = vmatpush2.msra.mxu0 0.0
    %119 = vmatprep.subr.mxu0 0.0
    %120 = vmatpush2.msra.mxu0 0.0
    %121 = vmatprep.subr.mxu0 0.0
    %122 = vmatpush2.msra.mxu0 0.0
    %123 = vmatprep.subr.mxu0 0.0
    %124 = vmatpush2.msra.mxu0 0.0
    %125 = vmatprep.subr.mxu0 0.0
    %126 = vmatpush2.msra.mxu0 0.0
    %127 = vmatprep.subr.mxu0 0.0
    %128 = vmatpush2.msra.mxu0 0.0
    %129 = vmatprep.mubr.f32.mxu0 0.0
    %130 = vmatmul.mubr.f32.gmra.mxu0 %v63
    %v131 = vpop.f32.mrf.mxu0
    %v132 = vadd.f32 %v60, %v131
    %v133 = vpop.f32.mrf.mxu0
    %134 = vdwg.mxu0
    %v135 = vmax.f32 %v132, 0.0
    %s136 = scalar_lea.vmem [#allocation4], 64
    %v137 = vld [vmem:[%s136] sm:$0xff]
    %v138 = vld [vmem:[%s136 + $0x8] sm:$0xff]
    %v139 = vld [vmem:[%s136 + $0x10] sm:$0xff]
    %v140 = vld [vmem:[%s136 + $0x18] sm:$0xff]
    %v141 = vld [vmem:[%s136 + $0x20] sm:$0xff]
    %v142 = vld [vmem:[%s136 + $0x28] sm:$0xff]
    %v143 = vld [vmem:[%s136 + $0x30] sm:$0xff]
    %v144 = vld [vmem:[%s136 + $0x38] sm:$0xff]
    %v145 = vld [vmem:[#allocation6 + $0x1] sm:$0x1]
    %v146 = vlaneseq
    %v147 = vshrl.u32 %v146, 7
    %v148 = vsub.s32 0, %v147
    %v149 = vrot.slane %v145, %v148
    %vm150 = vcmask 523264
    %v152 = vsel %vm150, %v135, 0
    %154 = vmatprep.subr.mxu0 0.0
    %155 = vmatpush1.msra.mxu0 0.0
    %156 = vmatprep.subr.mxu0 0.0
    %157 = vmatpush1.msra.mxu0 0.0
    %158 = vmatprep.subr.mxu0 0.0
    %159 = vmatpush1.msra.mxu0 0.0
    %160 = vmatprep.subr.mxu0 0.0
    %161 = vmatpush1.msra.mxu0 0.0
    %162 = vmatprep.subr.mxu0 0.0
    %163 = vmatpush1.msra.mxu0 0.0
    %164 = vmatprep.subr.mxu0 0.0
    %165 = vmatpush1.msra.mxu0 0.0
    %166 = vmatprep.subr.mxu0 0.0
    %167 = vmatpush1.msra.mxu0 0.0
    %168 = vmatprep.subr.mxu0 0.0
    %169 = vmatpush1.msra.mxu0 0.0
    %170 = vmatprep.subr.mxu0 0.0
    %171 = vmatpush1.msra.mxu0 %v144
    %172 = vmatprep.subr.mxu0 0.0
    %173 = vmatpush1.msra.mxu0 %v143
    %174 = vmatprep.subr.mxu0 0.0
    %175 = vmatpush1.msra.mxu0 %v142
    %176 = vmatprep.subr.mxu0 0.0
    %177 = vmatpush1.msra.mxu0 %v141
    %178 = vmatprep.subr.mxu0 0.0
    %179 = vmatpush1.msra.mxu0 %v140
    %180 = vmatprep.subr.mxu0 0.0
    %181 = vmatpush1.msra.mxu0 %v139
    %182 = vmatprep.subr.mxu0 0.0
    %183 = vmatpush1.msra.mxu0 %v138
    %184 = vmatprep.subr.mxu0 0.0
    %185 = vmatpush1.msra.mxu0 %v137
    %186 = vmatprep.subr.mxu0 0.0
    %187 = vmatpush2.msra.mxu0 0.0
    %188 = vmatprep.subr.mxu0 0.0
    %189 = vmatpush2.msra.mxu0 0.0
    %190 = vmatprep.subr.mxu0 0.0
    %191 = vmatpush2.msra.mxu0 0.0
    %192 = vmatprep.subr.mxu0 0.0
    %193 = vmatpush2.msra.mxu0 0.0
    %194 = vmatprep.subr.mxu0 0.0
    %195 = vmatpush2.msra.mxu0 0.0
    %196 = vmatprep.subr.mxu0 0.0
    %197 = vmatpush2.msra.mxu0 0.0
    %198 = vmatprep.subr.mxu0 0.0
    %199 = vmatpush2.msra.mxu0 0.0
    %200 = vmatprep.subr.mxu0 0.0
    %201 = vmatpush2.msra.mxu0 0.0
    %202 = vmatprep.subr.mxu0 0.0
    %203 = vmatpush2.msra.mxu0 0.0
    %204 = vmatprep.subr.mxu0 0.0
    %205 = vmatpush2.msra.mxu0 0.0
    %206 = vmatprep.subr.mxu0 0.0
    %207 = vmatpush2.msra.mxu0 0.0
    %208 = vmatprep.subr.mxu0 0.0
    %209 = vmatpush2.msra.mxu0 0.0
    %210 = vmatprep.subr.mxu0 0.0
    %211 = vmatpush2.msra.mxu0 0.0
    %212 = vmatprep.subr.mxu0 0.0
    %213 = vmatpush2.msra.mxu0 0.0
    %214 = vmatprep.subr.mxu0 0.0
    %215 = vmatpush2.msra.mxu0 0.0
    %216 = vmatprep.subr.mxu0 0.0
    %217 = vmatpush2.msra.mxu0 0.0
    %218 = vmatprep.mubr.f32.mxu0 0.0
    %219 = vmatmul.mubr.f32.gmra.mxu0 %v152
    %v220 = vpop.f32.mrf.mxu0
    %v221 = vadd.f32 %v149, %v220
    %v222 = vpop.f32.mrf.mxu0
    %223 = vdwg.mxu0
    %v224 = vmax.f32 %v221, 0.0
    %s225 = scalar_lea.vmem [#allocation4], 128
    %v226 = vld [vmem:[%s225] sm:$0xff]
    %v227 = vld [vmem:[%s225 + $0x8] sm:$0xff]
    %v228 = vld [vmem:[%s225 + $0x10] sm:$0xff]
    %v229 = vld [vmem:[%s225 + $0x18] sm:$0xff]
    %v230 = vld [vmem:[%s225 + $0x20] sm:$0xff]
    %v231 = vld [vmem:[%s225 + $0x28] sm:$0xff]
    %v232 = vld [vmem:[%s225 + $0x30] sm:$0xff]
    %v233 = vld [vmem:[%s225 + $0x38] sm:$0xff]
    %v234 = vld [vmem:[#allocation6 + $0x2] sm:$0x1]
    %v235 = vlaneseq
    %v236 = vshrl.u32 %v235, 7
    %v237 = vsub.s32 0, %v236
    %v238 = vrot.slane %v234, %v237
    %v240 = vsel %vm150, %v224, 0
    %242 = vmatprep.subr.mxu0 0.0
    %243 = vmatpush1.msra.mxu0 0.0
    %244 = vmatprep.subr.mxu0 0.0
    %245 = vmatpush1.msra.mxu0 0.0
    %246 = vmatprep.subr.mxu0 0.0
    %247 = vmatpush1.msra.mxu0 0.0
    %248 = vmatprep.subr.mxu0 0.0
    %249 = vmatpush1.msra.mxu0 0.0
    %250 = vmatprep.subr.mxu0 0.0
    %251 = vmatpush1.msra.mxu0 0.0
    %252 = vmatprep.subr.mxu0 0.0
    %253 = vmatpush1.msra.mxu0 0.0
    %254 = vmatprep.subr.mxu0 0.0
    %255 = vmatpush1.msra.mxu0 0.0
    %256 = vmatprep.subr.mxu0 0.0
    %257 = vmatpush1.msra.mxu0 0.0
    %258 = vmatprep.subr.mxu0 0.0
    %259 = vmatpush1.msra.mxu0 %v233
    %260 = vmatprep.subr.mxu0 0.0
    %261 = vmatpush1.msra.mxu0 %v232
    %262 = vmatprep.subr.mxu0 0.0
    %263 = vmatpush1.msra.mxu0 %v231
    %264 = vmatprep.subr.mxu0 0.0
    %265 = vmatpush1.msra.mxu0 %v230
    %266 = vmatprep.subr.mxu0 0.0
    %267 = vmatpush1.msra.mxu0 %v229
    %268 = vmatprep.subr.mxu0 0.0
    %269 = vmatpush1.msra.mxu0 %v228
    %270 = vmatprep.subr.mxu0 0.0
    %271 = vmatpush1.msra.mxu0 %v227
    %272 = vmatprep.subr.mxu0 0.0
    %273 = vmatpush1.msra.mxu0 %v226
    %274 = vmatprep.subr.mxu0 0.0
    %275 = vmatpush2.msra.mxu0 0.0
    %276 = vmatprep.subr.mxu0 0.0
    %277 = vmatpush2.msra.mxu0 0.0
    %278 = vmatprep.subr.mxu0 0.0
    %279 = vmatpush2.msra.mxu0 0.0
    %280 = vmatprep.subr.mxu0 0.0
    %281 = vmatpush2.msra.mxu0 0.0
    %282 = vmatprep.subr.mxu0 0.0
    %283 = vmatpush2.msra.mxu0 0.0
    %284 = vmatprep.subr.mxu0 0.0
    %285 = vmatpush2.msra.mxu0 0.0
    %286 = vmatprep.subr.mxu0 0.0
    %287 = vmatpush2.msra.mxu0 0.0
    %288 = vmatprep.subr.mxu0 0.0
    %289 = vmatpush2.msra.mxu0 0.0
    %290 = vmatprep.subr.mxu0 0.0
    %291 = vmatpush2.msra.mxu0 0.0
    %292 = vmatprep.subr.mxu0 0.0
    %293 = vmatpush2.msra.mxu0 0.0
    %294 = vmatprep.subr.mxu0 0.0
    %295 = vmatpush2.msra.mxu0 0.0
    %296 = vmatprep.subr.mxu0 0.0
    %297 = vmatpush2.msra.mxu0 0.0
    %298 = vmatprep.subr.mxu0 0.0
    %299 = vmatpush2.msra.mxu0 0.0
    %300 = vmatprep.subr.mxu0 0.0
    %301 = vmatpush2.msra.mxu0 0.0
    %302 = vmatprep.subr.mxu0 0.0
    %303 = vmatpush2.msra.mxu0 0.0
    %304 = vmatprep.subr.mxu0 0.0
    %305 = vmatpush2.msra.mxu0 0.0
    %306 = vmatprep.mubr.f32.mxu0 0.0
    %307 = vmatmul.mubr.f32.gmra.mxu0 %v240
    %v308 = vpop.f32.mrf.mxu0
    %v309 = vadd.f32 %v238, %v308
    %v310 = vpop.f32.mrf.mxu0
    %311 = vdwg.mxu0
    %v312 = vmax.f32 %v309, 0.0
    %s313 = scalar_lea.vmem [#allocation4], 192
    %v314 = vld [vmem:[%s313] sm:$0xff]
    %v315 = vld [vmem:[%s313 + $0x8] sm:$0xff]
    %v316 = vld [vmem:[%s313 + $0x10] sm:$0xff]
    %v317 = vld [vmem:[%s313 + $0x18] sm:$0xff]
    %v318 = vld [vmem:[#allocation6 + $0x3] sm:$0x1]
    %v319 = vlaneseq
    %v320 = vshrl.u32 %v319, 7
    %v321 = vsub.s32 0, %v320
    %v322 = vrot.slane %v318, %v321
    %v324 = vsel %vm61, %v312, 0
    %326 = vmatprep.subr.mxu0 0.0
    %327 = vmatpush1.msra.mxu0 0.0
    %328 = vmatprep.subr.mxu0 0.0
    %329 = vmatpush1.msra.mxu0 0.0
    %330 = vmatprep.subr.mxu0 0.0
    %331 = vmatpush1.msra.mxu0 0.0
    %332 = vmatprep.subr.mxu0 0.0
    %333 = vmatpush1.msra.mxu0 0.0
    %334 = vmatprep.subr.mxu0 0.0
    %335 = vmatpush1.msra.mxu0 0.0
    %336 = vmatprep.subr.mxu0 0.0
    %337 = vmatpush1.msra.mxu0 0.0
    %338 = vmatprep.subr.mxu0 0.0
    %339 = vmatpush1.msra.mxu0 0.0
    %340 = vmatprep.subr.mxu0 0.0
    %341 = vmatpush1.msra.mxu0 0.0
    %342 = vmatprep.subr.mxu0 0.0
    %343 = vmatpush1.msra.mxu0 0.0
    %344 = vmatprep.subr.mxu0 0.0
    %345 = vmatpush1.msra.mxu0 0.0
    %346 = vmatprep.subr.mxu0 0.0
    %347 = vmatpush1.msra.mxu0 0.0
    %348 = vmatprep.subr.mxu0 0.0
    %349 = vmatpush1.msra.mxu0 0.0
    %350 = vmatprep.subr.mxu0 0.0
    %351 = vmatpush1.msra.mxu0 %v317
    %352 = vmatprep.subr.mxu0 0.0
    %353 = vmatpush1.msra.mxu0 %v316
    %354 = vmatprep.subr.mxu0 0.0
    %355 = vmatpush1.msra.mxu0 %v315
    %356 = vmatprep.subr.mxu0 0.0
    %357 = vmatpush1.msra.mxu0 %v314
    %358 = vmatprep.subr.mxu0 0.0
    %359 = vmatpush2.msra.mxu0 0.0
    %360 = vmatprep.subr.mxu0 0.0
    %361 = vmatpush2.msra.mxu0 0.0
    %362 = vmatprep.subr.mxu0 0.0
    %363 = vmatpush2.msra.mxu0 0.0
    %364 = vmatprep.subr.mxu0 0.0
    %365 = vmatpush2.msra.mxu0 0.0
    %366 = vmatprep.subr.mxu0 0.0
    %367 = vmatpush2.msra.mxu0 0.0
    %368 = vmatprep.subr.mxu0 0.0
    %369 = vmatpush2.msra.mxu0 0.0
    %370 = vmatprep.subr.mxu0 0.0
    %371 = vmatpush2.msra.mxu0 0.0
    %372 = vmatprep.subr.mxu0 0.0
    %373 = vmatpush2.msra.mxu0 0.0
    %374 = vmatprep.subr.mxu0 0.0
    %375 = vmatpush2.msra.mxu0 0.0
    %376 = vmatprep.subr.mxu0 0.0
    %377 = vmatpush2.msra.mxu0 0.0
    %378 = vmatprep.subr.mxu0 0.0
    %379 = vmatpush2.msra.mxu0 0.0
    %380 = vmatprep.subr.mxu0 0.0
    %381 = vmatpush2.msra.mxu0 0.0
    %382 = vmatprep.subr.mxu0 0.0
    %383 = vmatpush2.msra.mxu0 0.0
    %384 = vmatprep.subr.mxu0 0.0
    %385 = vmatpush2.msra.mxu0 0.0
    %386 = vmatprep.subr.mxu0 0.0
    %387 = vmatpush2.msra.mxu0 0.0
    %388 = vmatprep.subr.mxu0 0.0
    %389 = vmatpush2.msra.mxu0 0.0
    %390 = vmatprep.mubr.f32.mxu0 0.0
    %391 = vmatmul.mubr.f32.gmra.mxu0 %v324
    %v392 = vpop.f32.mrf.mxu0
    %v393 = vadd.f32 %v322, %v392
    %v394 = vpop.f32.mrf.mxu0
    %395 = vdwg.mxu0
    %v396 = vmax.f32 %v393, 0.0
    %s397 = scalar_lea.vmem [#allocation4], 256
    %v398 = vld [vmem:[%s397] sm:$0x1]
    %v399 = vld [vmem:[#allocation6 + $0x4] sm:$0x1]
    %v400 = vlaneseq
    %v401 = vshrl.u32 %v400, 7
    %v402 = vsub.s32 0, %v401
    %v403 = vrot.slane %v398, %v402
    %v404 = vmul.f32 %v396, %v403
    %v405 = vsel %vm61, %v404, 0.0
    %406 = vadd.xlane.f32.xlu0 %v405
    %v407 = vpop.xlane.xlu0 %406
    %v408 = vlaneseq
    %v409 = vshrl.u32 %v408, 7
    %v410 = vsub.s32 0, %v409
    %v411 = vrot.slane %v399, %v410
    %v412 = vadd.f32 %v407, %v411
    %vm413 = vcmask 7168
    %414 = vst.msk [vmem:[%s3] sm:$0xff] %vm413, %v412
    // Predicated region
    $region26: #{tpu_custom_call.1} parent=1 // pred_check
      _
    $region27: #{tpu_custom_call.1} parent=1 // pred_check_branch
      %416 = sbr.rel (0) target = $region29
    $region28: #{tpu_custom_call.1} parent=1 // pred_region
      _
    $region29: #{tpu_custom_call.1} parent=1 // pred_fallthru
      _
    // Predicated region
    $region30: #{tpu_custom_call.1} parent=1 // pred_check
      _
    $region31: #{tpu_custom_call.1} parent=1 // pred_check_branch
      %418 = sbr.rel (0) target = $region33
    $region32: #{tpu_custom_call.1} parent=1 // pred_region
      _
    $region33: #{tpu_custom_call.1} parent=1 // pred_fallthru
      _
    %419 = vsyncpa [#allocation3], 1
    %420 = vsyncpa [#allocation5], 1

</llo_original>
